<compile_context>
chip_gen: v6e
topology: v6e:2x2x1
jax: 0.10.0
libtpu: 0.0.40
codegen_flags: <defaults>
</compile_context>

<pallas_src>
import jax
import jax.numpy as jnp
from jax.experimental import pallas as pl
from jax.experimental.pallas import tpu as pltpu


def _rup(x, m):
    return ((x + m - 1) // m) * m


def rnn_fused_kernel(emb_ref, w_ih_ref, w_hh_ref, b_h_ref, w_fc_ref, b_fc_ref,
                     out_ref):
    Bp, T, Ep = emb_ref.shape
    Hp = w_hh_ref.shape[0]

    # --- Hoisted input projection: one MXU matmul over ALL timesteps. ---
    #   x_proj[b, t, :] = emb[b, t, :] @ W_ih^T + (b_ih + b_hh)
    emb2d = emb_ref[...].reshape(Bp * T, Ep)                   # layout-trivial merge
    x_proj = (
        jnp.dot(emb2d, w_ih_ref[...], preferred_element_type=jnp.float32)
        + b_h_ref[...]                                         # bias folded in once
    ).reshape(Bp, T, Hp)

    # --- Serial recurrence: only (Bp,Hp)x(Hp,Hp) dot + tanh on the critical path.
    w_hh = w_hh_ref[...]                                       # loaded once
    h = jnp.zeros((Bp, Hp), jnp.float32)
    for t in range(T):                                         # T static -> unrolled
        h = jnp.tanh(
            x_proj[:, t, :]
            + jnp.dot(h, w_hh, preferred_element_type=jnp.float32)
        )

    # --- Fused final Linear on the last hidden state (lane-dense (Bp, Op) store).
    out_ref[...] = (
        jnp.dot(h, w_fc_ref[...], preferred_element_type=jnp.float32)
        + b_fc_ref[...]
    ).astype(out_ref.dtype)


def rnn_forward(x_tokens, emb_table, w_ih, w_hh, b_ih, b_hh, w_fc, b_fc):
    """x_tokens: (B, T) int32.  Weights follow PyTorch conventions:
       emb_table (V, E), w_ih (H, E), w_hh (H, H), b_ih/b_hh (H,),
       w_fc (O, H), b_fc (O,).  Returns (B, O) float32."""
    B, T = x_tokens.shape
    E = emb_table.shape[1]
    H = w_ih.shape[0]
    O = w_fc.shape[0]

    # Lane/sublane-dense padded sizes.
    Bp = _rup(B, 8)
    Ep = _rup(E, 128)
    Hp = _rup(H, 128)
    Op = _rup(O, 128)

    # Glue: embedding gather in plain JAX (TODO(synk): in-kernel gather via scalar
    # prefetch + Element-indexed BlockSpec for large vocab).  Keep batch-major.
    emb = jnp.take(emb_table, x_tokens, axis=0).astype(jnp.float32)      # (B, T, E)
    emb_p = jnp.pad(emb, ((0, Bp - B), (0, 0), (0, Ep - E)))             # (Bp, T, Ep)

    # Pre-transpose + zero-pad weights so the kernel does plain row-major matmuls.
    # Zero padding keeps padded hidden lanes exactly 0 through the recurrence.
    w_ih_p = jnp.pad(w_ih.T.astype(jnp.float32), ((0, Ep - E), (0, Hp - H)))  # (Ep, Hp)
    w_hh_p = jnp.pad(w_hh.T.astype(jnp.float32), ((0, Hp - H), (0, Hp - H)))  # (Hp, Hp)
    b_h_p = jnp.pad((b_ih + b_hh).astype(jnp.float32).reshape(1, H),
                    ((0, 0), (0, Hp - H)))                                    # (1, Hp)
    w_fc_p = jnp.pad(w_fc.T.astype(jnp.float32), ((0, Hp - H), (0, Op - O)))  # (Hp, Op)
    b_fc_p = jnp.pad(b_fc.astype(jnp.float32).reshape(1, O),
                     ((0, 0), (0, Op - O)))                                   # (1, Op)

    out_p = pl.pallas_call(
        rnn_fused_kernel,
        out_shape=jax.ShapeDtypeStruct((Bp, Op), jnp.float32),
        # Single invocation (no grid): everything resident in VMEM once,
        # no per-timestep grid-step overhead, no double-buffered weights.
        in_specs=[pl.BlockSpec(memory_space=pltpu.MemorySpace.VMEM)] * 6,
        out_specs=pl.BlockSpec(memory_space=pltpu.MemorySpace.VMEM),
    )(emb_p, w_ih_p, w_hh_p, b_h_p, w_fc_p, b_fc_p)

    return out_p[:B, :O]


def rnn_forward_ref(x_tokens, emb_table, w_ih, w_hh, b_ih, b_hh, w_fc, b_fc):
    """Pure-JAX reference of the same forward pass."""
    emb = jnp.take(emb_table, x_tokens, axis=0)        # (B, T, E)
    B = x_tokens.shape[0]
    H = w_ih.shape[0]
    h = jnp.zeros((B, H), jnp.float32)
    for t in range(x_tokens.shape[1]):
        h = jnp.tanh(emb[:, t, :] @ w_ih.T + b_ih + h @ w_hh.T + b_hh)
    return h @ w_fc.T + b_fc


if __name__ == "__main__":
    # Small, deterministic problem sizes.
    vocab_size, emb_size, padding_idx = 50, 16, 0
    output_size, hidden_size = 4, 32
    B, T = 2, 8

    key = jax.random.PRNGKey(0)
    ks = jax.random.split(key, 8)

    # Deterministic parameter init (PyTorch-like scales).
    emb_table = 0.1 * jax.random.normal(ks[0], (vocab_size, emb_size), jnp.float32)
    emb_table = emb_table.at[padding_idx].set(0.0)     # padding_idx row is zero
    bound = 1.0 / jnp.sqrt(hidden_size)
    w_ih = jax.random.uniform(ks[1], (hidden_size, emb_size), jnp.float32, -bound, bound)
    w_hh = jax.random.uniform(ks[2], (hidden_size, hidden_size), jnp.float32, -bound, bound)
    b_ih = jax.random.uniform(ks[3], (hidden_size,), jnp.float32, -bound, bound)
    b_hh = jax.random.uniform(ks[4], (hidden_size,), jnp.float32, -bound, bound)
    w_fc = jax.random.uniform(ks[5], (output_size, hidden_size), jnp.float32, -bound, bound)
    b_fc = jax.random.uniform(ks[6], (output_size,), jnp.float32, -bound, bound)

    # Token ids (include some padding_idx tokens).
    x = jax.random.randint(ks[7], (B, T), 0, vocab_size, dtype=jnp.int32)
    x = x.at[0, -2:].set(padding_idx)

    out = rnn_forward(x, emb_table, w_ih, w_hh, b_ih, b_hh, w_fc, b_fc)
    out = jax.block_until_ready(out)

    ref = rnn_forward_ref(x, emb_table, w_ih, w_hh, b_ih, b_hh, w_fc, b_fc)
    assert out.shape == (B, output_size)
    assert jnp.allclose(out, ref, atol=1e-5, rtol=1e-5), (out, ref)

    print("KERNEL_OK")
</pallas_src>

<mosaic_0001>
module attributes {stable_mosaic.version = 11 : i64} {
  func.func @rnn_fused_kernel(%arg0: memref<8x8x128xf32, #tpu.memory_space<vmem>>, %arg1: memref<128x128xf32, #tpu.memory_space<vmem>>, %arg2: memref<128x128xf32, #tpu.memory_space<vmem>>, %arg3: memref<1x128xf32, #tpu.memory_space<vmem>>, %arg4: memref<128x128xf32, #tpu.memory_space<vmem>>, %arg5: memref<1x128xf32, #tpu.memory_space<vmem>>, %arg6: memref<8x128xf32, #tpu.memory_space<vmem>>) attributes {dimension_semantics = [], scalar_prefetch = 0 : i64, scratch_operands = 0 : i64, tpu.core_type = #tpu.core_type<tc>} {
    %c0 = arith.constant 0 : index
    %c0_0 = arith.constant 0 : index
    %c0_1 = arith.constant 0 : index
    %0 = vector.load %arg0[%c0, %c0_0, %c0_1] : memref<8x8x128xf32, #tpu.memory_space<vmem>>, vector<8x8x128xf32>
    %1 = vector.shape_cast %0 : vector<8x8x128xf32> to vector<64x128xf32>
    %c0_2 = arith.constant 0 : index
    %c0_3 = arith.constant 0 : index
    %2 = vector.load %arg1[%c0_2, %c0_3] : memref<128x128xf32, #tpu.memory_space<vmem>>, vector<128x128xf32>
    %cst = arith.constant dense<0.000000e+00> : vector<64x128xf32>
    %3 = tpu.matmul %1, %2, %cst {dimension_numbers = #tpu.dot_dimension_numbers<[1], [0], [0], [1], [0, 0, 1, 1], [], []>} : vector<64x128xf32>, vector<128x128xf32>, vector<64x128xf32> -> vector<64x128xf32>
    %c0_4 = arith.constant 0 : index
    %c0_5 = arith.constant 0 : index
    %4 = vector.load %arg3[%c0_4, %c0_5] : memref<1x128xf32, #tpu.memory_space<vmem>>, vector<1x128xf32>
    %5 = vector.broadcast %4 : vector<1x128xf32> to vector<64x128xf32>
    %6 = arith.addf %3, %5 : vector<64x128xf32>
    %7 = vector.shape_cast %6 : vector<64x128xf32> to vector<8x8x128xf32>
    %c0_6 = arith.constant 0 : index
    %c0_7 = arith.constant 0 : index
    %8 = vector.load %arg2[%c0_6, %c0_7] : memref<128x128xf32, #tpu.memory_space<vmem>>, vector<128x128xf32>
    %cst_8 = arith.constant 0.000000e+00 : f32
    %9 = vector.broadcast %cst_8 : f32 to vector<8x128xf32>
    %10 = vector.extract_strided_slice %7 {offsets = [0, 0, 0], sizes = [8, 1, 128], strides = [1, 1, 1]} : vector<8x8x128xf32> to vector<8x1x128xf32>
    %11 = vector.shape_cast %10 : vector<8x1x128xf32> to vector<8x128xf32>
    %cst_9 = arith.constant dense<0.000000e+00> : vector<8x128xf32>
    %12 = tpu.matmul %9, %8, %cst_9 {dimension_numbers = #tpu.dot_dimension_numbers<[1], [0], [0], [1], [0, 0, 1, 1], [], []>} : vector<8x128xf32>, vector<128x128xf32>, vector<8x128xf32> -> vector<8x128xf32>
    %13 = arith.addf %11, %12 : vector<8x128xf32>
    %14 = math.tanh %13 : vector<8x128xf32>
    %15 = vector.extract_strided_slice %7 {offsets = [0, 1, 0], sizes = [8, 1, 128], strides = [1, 1, 1]} : vector<8x8x128xf32> to vector<8x1x128xf32>
    %16 = vector.shape_cast %15 : vector<8x1x128xf32> to vector<8x128xf32>
    %cst_10 = arith.constant dense<0.000000e+00> : vector<8x128xf32>
    %17 = tpu.matmul %14, %8, %cst_10 {dimension_numbers = #tpu.dot_dimension_numbers<[1], [0], [0], [1], [0, 0, 1, 1], [], []>} : vector<8x128xf32>, vector<128x128xf32>, vector<8x128xf32> -> vector<8x128xf32>
    %18 = arith.addf %16, %17 : vector<8x128xf32>
    %19 = math.tanh %18 : vector<8x128xf32>
    %20 = vector.extract_strided_slice %7 {offsets = [0, 2, 0], sizes = [8, 1, 128], strides = [1, 1, 1]} : vector<8x8x128xf32> to vector<8x1x128xf32>
    %21 = vector.shape_cast %20 : vector<8x1x128xf32> to vector<8x128xf32>
    %cst_11 = arith.constant dense<0.000000e+00> : vector<8x128xf32>
    %22 = tpu.matmul %19, %8, %cst_11 {dimension_numbers = #tpu.dot_dimension_numbers<[1], [0], [0], [1], [0, 0, 1, 1], [], []>} : vector<8x128xf32>, vector<128x128xf32>, vector<8x128xf32> -> vector<8x128xf32>
    %23 = arith.addf %21, %22 : vector<8x128xf32>
    %24 = math.tanh %23 : vector<8x128xf32>
    %25 = vector.extract_strided_slice %7 {offsets = [0, 3, 0], sizes = [8, 1, 128], strides = [1, 1, 1]} : vector<8x8x128xf32> to vector<8x1x128xf32>
    %26 = vector.shape_cast %25 : vector<8x1x128xf32> to vector<8x128xf32>
    %cst_12 = arith.constant dense<0.000000e+00> : vector<8x128xf32>
    %27 = tpu.matmul %24, %8, %cst_12 {dimension_numbers = #tpu.dot_dimension_numbers<[1], [0], [0], [1], [0, 0, 1, 1], [], []>} : vector<8x128xf32>, vector<128x128xf32>, vector<8x128xf32> -> vector<8x128xf32>
    %28 = arith.addf %26, %27 : vector<8x128xf32>
    %29 = math.tanh %28 : vector<8x128xf32>
    %30 = vector.extract_strided_slice %7 {offsets = [0, 4, 0], sizes = [8, 1, 128], strides = [1, 1, 1]} : vector<8x8x128xf32> to vector<8x1x128xf32>
    %31 = vector.shape_cast %30 : vector<8x1x128xf32> to vector<8x128xf32>
    %cst_13 = arith.constant dense<0.000000e+00> : vector<8x128xf32>
    %32 = tpu.matmul %29, %8, %cst_13 {dimension_numbers = #tpu.dot_dimension_numbers<[1], [0], [0], [1], [0, 0, 1, 1], [], []>} : vector<8x128xf32>, vector<128x128xf32>, vector<8x128xf32> -> vector<8x128xf32>
    %33 = arith.addf %31, %32 : vector<8x128xf32>
    %34 = math.tanh %33 : vector<8x128xf32>
    %35 = vector.extract_strided_slice %7 {offsets = [0, 5, 0], sizes = [8, 1, 128], strides = [1, 1, 1]} : vector<8x8x128xf32> to vector<8x1x128xf32>
    %36 = vector.shape_cast %35 : vector<8x1x128xf32> to vector<8x128xf32>
    %cst_14 = arith.constant dense<0.000000e+00> : vector<8x128xf32>
    %37 = tpu.matmul %34, %8, %cst_14 {dimension_numbers = #tpu.dot_dimension_numbers<[1], [0], [0], [1], [0, 0, 1, 1], [], []>} : vector<8x128xf32>, vector<128x128xf32>, vector<8x128xf32> -> vector<8x128xf32>
    %38 = arith.addf %36, %37 : vector<8x128xf32>
    %39 = math.tanh %38 : vector<8x128xf32>
    %40 = vector.extract_strided_slice %7 {offsets = [0, 6, 0], sizes = [8, 1, 128], strides = [1, 1, 1]} : vector<8x8x128xf32> to vector<8x1x128xf32>
    %41 = vector.shape_cast %40 : vector<8x1x128xf32> to vector<8x128xf32>
    %cst_15 = arith.constant dense<0.000000e+00> : vector<8x128xf32>
    %42 = tpu.matmul %39, %8, %cst_15 {dimension_numbers = #tpu.dot_dimension_numbers<[1], [0], [0], [1], [0, 0, 1, 1], [], []>} : vector<8x128xf32>, vector<128x128xf32>, vector<8x128xf32> -> vector<8x128xf32>
    %43 = arith.addf %41, %42 : vector<8x128xf32>
    %44 = math.tanh %43 : vector<8x128xf32>
    %45 = vector.extract_strided_slice %7 {offsets = [0, 7, 0], sizes = [8, 1, 128], strides = [1, 1, 1]} : vector<8x8x128xf32> to vector<8x1x128xf32>
    %46 = vector.shape_cast %45 : vector<8x1x128xf32> to vector<8x128xf32>
    %cst_16 = arith.constant dense<0.000000e+00> : vector<8x128xf32>
    %47 = tpu.matmul %44, %8, %cst_16 {dimension_numbers = #tpu.dot_dimension_numbers<[1], [0], [0], [1], [0, 0, 1, 1], [], []>} : vector<8x128xf32>, vector<128x128xf32>, vector<8x128xf32> -> vector<8x128xf32>
    %48 = arith.addf %46, %47 : vector<8x128xf32>
    %49 = math.tanh %48 : vector<8x128xf32>
    %c0_17 = arith.constant 0 : index
    %c0_18 = arith.constant 0 : index
    %50 = vector.load %arg4[%c0_17, %c0_18] : memref<128x128xf32, #tpu.memory_space<vmem>>, vector<128x128xf32>
    %cst_19 = arith.constant dense<0.000000e+00> : vector<8x128xf32>
    %51 = tpu.matmul %49, %50, %cst_19 {dimension_numbers = #tpu.dot_dimension_numbers<[1], [0], [0], [1], [0, 0, 1, 1], [], []>} : vector<8x128xf32>, vector<128x128xf32>, vector<8x128xf32> -> vector<8x128xf32>
    %c0_20 = arith.constant 0 : index
    %c0_21 = arith.constant 0 : index
    %52 = vector.load %arg5[%c0_20, %c0_21] : memref<1x128xf32, #tpu.memory_space<vmem>>, vector<1x128xf32>
    %53 = vector.broadcast %52 : vector<1x128xf32> to vector<8x128xf32>
    %54 = arith.addf %51, %53 : vector<8x128xf32>
    %c0_22 = arith.constant 0 : index
    %c0_23 = arith.constant 0 : index
    %55 = vector.load %arg6[%c0_22, %c0_23] : memref<8x128xf32, #tpu.memory_space<vmem>>, vector<8x128xf32>
    tpu.vector_store %arg6[%c0_22, %c0_23], %54 {strides = array<i32>} : memref<8x128xf32, #tpu.memory_space<vmem>>, vector<8x128xf32>,
    return
  }
}

</mosaic_0001>

<llo_original>
// kernel: tpu_custom_call.1
$region0: #{tpu_custom_call.1}
  #allocation0 [shape = 'u32[]', space=smem, size = 0x4, offset = 0x4, fixed_abs, tag = 'smem constant byte address 0x4 - core index']
  #allocation1 [shape = 'u32[144,128]{1,0:T(1,128)}', space=vmem, size = 0x12000, scoped, tag = 'internal scratch']
  %s0 = inlined_call_operand.hbm [shape: f32[8,8,128], index: 0, kind: input, shape index: {}]
  %s1 = inlined_call_operand.hbm [shape: f32[128,128], index: 1, kind: input, shape index: {}]
  %s2 = inlined_call_operand.hbm [shape: f32[128,128], index: 2, kind: input, shape index: {}]
  %s3 = inlined_call_operand.vmem [shape: f32[1,128], index: 3, kind: input, shape index: {}]
  %s4 = inlined_call_operand.hbm [shape: f32[128,128], index: 4, kind: input, shape index: {}]
  %s5 = inlined_call_operand.vmem [shape: f32[1,128], index: 5, kind: input, shape index: {}]
  %s6 = inlined_call_operand.hbm [shape: f32[8,128], index: 6, kind: output, shape index: {}]
  %s7 = sld [smem:[#allocation0]]
  $region50: #{tpu_custom_call.1} parent=0
    _
  %s9 = ssub.s32 1, %s7
  %s10 = scalar_select 0, %s9, %s7
  $region1: #{tpu_custom_call.1} parent=0
    #allocation2 [shape = 'u8[32768]{0}', space=vmem, size = 0x8000, scoped, tag = 'input window, operand 0, single buffered']
    #allocation3 [shape = 's32[1]{0}', space=sflag, size = 0x4, scoped, tag = 'scoped memory for tpu_custom_call.1']
    #allocation4 [shape = 's32[1]{0}', space=sflag, size = 0x4, scoped, tag = 'scoped memory for tpu_custom_call.1']
    #allocation5 [shape = 'u8[65536]{0}', space=vmem, size = 0x10000, scoped, tag = 'input window, operand 1, single buffered']
    #allocation6 [shape = 's32[1]{0}', space=sflag, size = 0x4, scoped, tag = 'scoped memory for tpu_custom_call.1']
    #allocation7 [shape = 'u8[65536]{0}', space=vmem, size = 0x10000, scoped, tag = 'input window, operand 2, single buffered']
    #allocation8 [shape = 'u8[65536]{0}', space=vmem, size = 0x10000, scoped, tag = 'input window, operand 4, single buffered']
    #allocation9 [shape = 's32[1]{0}', space=sflag, size = 0x4, scoped, tag = 'scoped memory for tpu_custom_call.1']
    #allocation10 [shape = 'u8[4096]{0}', space=vmem, size = 0x1000, scoped, tag = 'output window, operand 0, single buffered']
    %11 = vsyncpa [#allocation3], 0
    %12 = vsyncpa [#allocation6], 0
    %13 = vsyncpa [#allocation9], 0
    %14 = vsyncpa [#allocation4], 0
    // Predicated region
    $region2: #{tpu_custom_call.1} parent=1 // pred_check
      _
    $region3: #{tpu_custom_call.1} parent=1 // pred_check_branch
      %16 = sbr.rel (0) target = $region5
    $region4: #{tpu_custom_call.1} parent=1 // pred_region
      %s18 = ssub.s32 1024, 1024
      %19 = vsyncadd [#allocation3], %s18
      %s20 = sshll.u32 [#allocation2], 4
      %s21 = int_to_ptr.vmem [resolvable:$true] %s20
      %26 = dma.hbm_to_vmem [thread:$0]  %s0, 1024, %s21, [#allocation3], 128, 128, 8
    $region5: #{tpu_custom_call.1} parent=1 // pred_fallthru
      _
    // Predicated region
    $region6: #{tpu_custom_call.1} parent=1 // pred_check
      _
    $region7: #{tpu_custom_call.1} parent=1 // pred_check_branch
      %28 = sbr.rel (0) target = $region9
    $region8: #{tpu_custom_call.1} parent=1 // pred_region
      %s30 = ssub.s32 2048, 2048
      %31 = vsyncadd [#allocation6], %s30
      %s32 = sshll.u32 [#allocation5], 4
      %s33 = int_to_ptr.vmem [resolvable:$true] %s32
      %38 = dma.hbm_to_vmem [thread:$0]  %s1, 2048, %s33, [#allocation6], 128, 128, 8
    $region9: #{tpu_custom_call.1} parent=1 // pred_fallthru
      _
    // Predicated region
    $region10: #{tpu_custom_call.1} parent=1 // pred_check
      _
    $region11: #{tpu_custom_call.1} parent=1 // pred_check_branch
      %40 = sbr.rel (0) target = $region13
    $region12: #{tpu_custom_call.1} parent=1 // pred_region
      %s42 = ssub.s32 2048, 2048
      %43 = vsyncadd [#allocation6], %s42
      %s44 = sshll.u32 [#allocation7], 4
      %s45 = int_to_ptr.vmem [resolvable:$true] %s44
      %50 = dma.hbm_to_vmem [thread:$0]  %s2, 2048, %s45, [#allocation6], 128, 128, 8
    $region13: #{tpu_custom_call.1} parent=1 // pred_fallthru
      _
    // Predicated region
    $region14: #{tpu_custom_call.1} parent=1 // pred_check
      _
    $region15: #{tpu_custom_call.1} parent=1 // pred_check_branch
      %52 = sbr.rel (0) target = $region17
    $region16: #{tpu_custom_call.1} parent=1 // pred_region
      _
    $region17: #{tpu_custom_call.1} parent=1 // pred_fallthru
      _
    // Predicated region
    $region18: #{tpu_custom_call.1} parent=1 // pred_check
      _
    $region19: #{tpu_custom_call.1} parent=1 // pred_check_branch
      %54 = sbr.rel (0) target = $region21
    $region20: #{tpu_custom_call.1} parent=1 // pred_region
      %s56 = ssub.s32 2048, 2048
      %57 = vsyncadd [#allocation9], %s56
      %s58 = sshll.u32 [#allocation8], 4
      %s59 = int_to_ptr.vmem [resolvable:$true] %s58
      %64 = dma.hbm_to_vmem [thread:$0]  %s4, 2048, %s59, [#allocation9], 128, 128, 8
    $region21: #{tpu_custom_call.1} parent=1 // pred_fallthru
      _
    // Predicated region
    $region22: #{tpu_custom_call.1} parent=1 // pred_check
      _
    $region23: #{tpu_custom_call.1} parent=1 // pred_check_branch
      %66 = sbr.rel (0) target = $region25
    $region24: #{tpu_custom_call.1} parent=1 // pred_region
      _
    $region25: #{tpu_custom_call.1} parent=1 // pred_fallthru
      _
    // Predicated region
    $region26: #{tpu_custom_call.1} parent=1 // pred_check
      _
    $region27: #{tpu_custom_call.1} parent=1 // pred_check_branch
      %68 = sbr.rel (0) target = $region29
    $region28: #{tpu_custom_call.1} parent=1 // pred_region
      %69 = dma.done [#allocation3], 1024
    $region29: #{tpu_custom_call.1} parent=1 // pred_fallthru
      _
    // Predicated region
    $region30: #{tpu_custom_call.1} parent=1 // pred_check
      _
    $region31: #{tpu_custom_call.1} parent=1 // pred_check_branch
      %71 = sbr.rel (0) target = $region33
    $region32: #{tpu_custom_call.1} parent=1 // pred_region
      %72 = dma.done [#allocation6], 2048
    $region33: #{tpu_custom_call.1} parent=1 // pred_fallthru
      _
    // Predicated region
    $region34: #{tpu_custom_call.1} parent=1 // pred_check
      _
    $region35: #{tpu_custom_call.1} parent=1 // pred_check_branch
      %74 = sbr.rel (0) target = $region37
    $region36: #{tpu_custom_call.1} parent=1 // pred_region
      %75 = dma.done [#allocation6], 2048
    $region37: #{tpu_custom_call.1} parent=1 // pred_fallthru
      _
    // Predicated region
    $region38: #{tpu_custom_call.1} parent=1 // pred_check
      _
    $region39: #{tpu_custom_call.1} parent=1 // pred_check_branch
      %77 = sbr.rel (0) target = $region41
    $region40: #{tpu_custom_call.1} parent=1 // pred_region
      %78 = dma.done [#allocation9], 2048
    $region41: #{tpu_custom_call.1} parent=1 // pred_fallthru
      _
    %v79 = vld [vmem:[#allocation2] sm:$0xff]
    %v80 = vld [vmem:[#allocation2 + $0x8] sm:$0xff]
    %v81 = vld [vmem:[#allocation2 + $0x10] sm:$0xff]
    %v82 = vld [vmem:[#allocation2 + $0x18] sm:$0xff]
    %v83 = vld [vmem:[#allocation2 + $0x20] sm:$0xff]
    %v84 = vld [vmem:[#allocation2 + $0x28] sm:$0xff]
    %v85 = vld [vmem:[#allocation2 + $0x30] sm:$0xff]
    %v86 = vld [vmem:[#allocation2 + $0x38] sm:$0xff]
    %v87 = vld [vmem:[#allocation5] sm:$0xff]
    %v88 = vld [vmem:[#allocation5 + $0x8] sm:$0xff]
    %v89 = vld [vmem:[#allocation5 + $0x10] sm:$0xff]
    %v90 = vld [vmem:[#allocation5 + $0x18] sm:$0xff]
    %v91 = vld [vmem:[#allocation5 + $0x20] sm:$0xff]
    %v92 = vld [vmem:[#allocation5 + $0x28] sm:$0xff]
    %v93 = vld [vmem:[#allocation5 + $0x30] sm:$0xff]
    %v94 = vld [vmem:[#allocation5 + $0x38] sm:$0xff]
    %v95 = vld [vmem:[#allocation5 + $0x40] sm:$0xff]
    %v96 = vld [vmem:[#allocation5 + $0x48] sm:$0xff]
    %v97 = vld [vmem:[#allocation5 + $0x50] sm:$0xff]
    %v98 = vld [vmem:[#allocation5 + $0x58] sm:$0xff]
    %v99 = vld [vmem:[#allocation5 + $0x60] sm:$0xff]
    %v100 = vld [vmem:[#allocation5 + $0x68] sm:$0xff]
    %v101 = vld [vmem:[#allocation5 + $0x70] sm:$0xff]
    %v102 = vld [vmem:[#allocation5 + $0x78] sm:$0xff]
    %v103 = vld [vmem:[%s3] sm:$0x1]
    %v105 = vlaneseq
    %v106 = vshrl.u32 %v105, 7
    %v107 = vsub.s32 0, %v106
    %v108 = vrot.slane %v103, %v107
    %110 = vmatprep.subr.mxu0 0.0
    %111 = vmatpush1.msra.mxu0 %v102
    %112 = vmatprep.subr.mxu0 0.0
    %113 = vmatpush1.msra.mxu0 %v101
    %114 = vmatprep.subr.mxu0 0.0
    %115 = vmatpush1.msra.mxu0 %v100
    %116 = vmatprep.subr.mxu0 0.0
    %117 = vmatpush1.msra.mxu0 %v99
    %118 = vmatprep.subr.mxu0 0.0
    %119 = vmatpush1.msra.mxu0 %v98
    %120 = vmatprep.subr.mxu0 0.0
    %121 = vmatpush1.msra.mxu0 %v97
    %122 = vmatprep.subr.mxu0 0.0
    %123 = vmatpush1.msra.mxu0 %v96
    %124 = vmatprep.subr.mxu0 0.0
    %125 = vmatpush1.msra.mxu0 %v95
    %126 = vmatprep.subr.mxu0 0.0
    %127 = vmatpush1.msra.mxu0 %v94
    %128 = vmatprep.subr.mxu0 0.0
    %129 = vmatpush1.msra.mxu0 %v93
    %130 = vmatprep.subr.mxu0 0.0
    %131 = vmatpush1.msra.mxu0 %v92
    %132 = vmatprep.subr.mxu0 0.0
    %133 = vmatpush1.msra.mxu0 %v91
    %134 = vmatprep.subr.mxu0 0.0
    %135 = vmatpush1.msra.mxu0 %v90
    %136 = vmatprep.subr.mxu0 0.0
    %137 = vmatpush1.msra.mxu0 %v89
    %138 = vmatprep.subr.mxu0 0.0
    %139 = vmatpush1.msra.mxu0 %v88
    %140 = vmatprep.subr.mxu0 0.0
    %141 = vmatpush1.msra.mxu0 %v87
    %142 = vmatprep.subr.mxu0 0.0
    %143 = vmatpush2.msra.mxu0 0.0
    %144 = vmatprep.subr.mxu0 0.0
    %145 = vmatpush2.msra.mxu0 0.0
    %146 = vmatprep.subr.mxu0 0.0
    %147 = vmatpush2.msra.mxu0 0.0
    %148 = vmatprep.subr.mxu0 0.0
    %149 = vmatpush2.msra.mxu0 0.0
    %150 = vmatprep.subr.mxu0 0.0
    %151 = vmatpush2.msra.mxu0 0.0
    %152 = vmatprep.subr.mxu0 0.0
    %153 = vmatpush2.msra.mxu0 0.0
    %154 = vmatprep.subr.mxu0 0.0
    %155 = vmatpush2.msra.mxu0 0.0
    %156 = vmatprep.subr.mxu0 0.0
    %157 = vmatpush2.msra.mxu0 0.0
    %158 = vmatprep.subr.mxu0 0.0
    %159 = vmatpush2.msra.mxu0 0.0
    %160 = vmatprep.subr.mxu0 0.0
    %161 = vmatpush2.msra.mxu0 0.0
    %162 = vmatprep.subr.mxu0 0.0
    %163 = vmatpush2.msra.mxu0 0.0
    %164 = vmatprep.subr.mxu0 0.0
    %165 = vmatpush2.msra.mxu0 0.0
    %166 = vmatprep.subr.mxu0 0.0
    %167 = vmatpush2.msra.mxu0 0.0
    %168 = vmatprep.subr.mxu0 0.0
    %169 = vmatpush2.msra.mxu0 0.0
    %170 = vmatprep.subr.mxu0 0.0
    %171 = vmatpush2.msra.mxu0 0.0
    %172 = vmatprep.subr.mxu0 0.0
    %173 = vmatpush2.msra.mxu0 0.0
    %174 = vmatprep.mubr.f32.mxu0 0.0
    %175 = vmatmul.mubr.f32.gmra.mxu0 %v79
    %v176 = vpop.f32.mrf.mxu0
    %v177 = vadd.f32 %v108, %v176
    %v178 = vpop.f32.mrf.mxu0
    %179 = vmatprep.mubr.f32.mxu0 0.0
    %180 = vmatmul.mubr.f32.gmra.mxu0 %v80
    %v181 = vpop.f32.mrf.mxu0
    %v182 = vadd.f32 %v108, %v181
    %v183 = vpop.f32.mrf.mxu0
    %184 = vmatprep.mubr.f32.mxu0 0.0
    %185 = vmatmul.mubr.f32.gmra.mxu0 %v81
    %v186 = vpop.f32.mrf.mxu0
    %v187 = vadd.f32 %v108, %v186
    %v188 = vpop.f32.mrf.mxu0
    %189 = vmatprep.mubr.f32.mxu0 0.0
    %190 = vmatmul.mubr.f32.gmra.mxu0 %v82
    %v191 = vpop.f32.mrf.mxu0
    %v192 = vadd.f32 %v108, %v191
    %v193 = vpop.f32.mrf.mxu0
    %194 = vmatprep.mubr.f32.mxu0 0.0
    %195 = vmatmul.mubr.f32.gmra.mxu0 %v83
    %v196 = vpop.f32.mrf.mxu0
    %v197 = vadd.f32 %v108, %v196
    %v198 = vpop.f32.mrf.mxu0
    %199 = vmatprep.mubr.f32.mxu0 0.0
    %200 = vmatmul.mubr.f32.gmra.mxu0 %v84
    %v201 = vpop.f32.mrf.mxu0
    %v202 = vadd.f32 %v108, %v201
    %v203 = vpop.f32.mrf.mxu0
    %204 = vmatprep.mubr.f32.mxu0 0.0
    %205 = vmatmul.mubr.f32.gmra.mxu0 %v85
    %v206 = vpop.f32.mrf.mxu0
    %v207 = vadd.f32 %v108, %v206
    %v208 = vpop.f32.mrf.mxu0
    %209 = vmatprep.mubr.f32.mxu0 0.0
    %210 = vmatmul.mubr.f32.gmra.mxu0 %v86
    %v211 = vpop.f32.mrf.mxu0
    %v212 = vadd.f32 %v108, %v211
    %v213 = vpop.f32.mrf.mxu0
    %214 = vdwg.mxu0
    %v215 = vld [vmem:[#allocation7] sm:$0xff]
    %v216 = vld [vmem:[#allocation7 + $0x8] sm:$0xff]
    %v217 = vld [vmem:[#allocation7 + $0x10] sm:$0xff]
    %v218 = vld [vmem:[#allocation7 + $0x18] sm:$0xff]
    %v219 = vld [vmem:[#allocation7 + $0x20] sm:$0xff]
    %v220 = vld [vmem:[#allocation7 + $0x28] sm:$0xff]
    %v221 = vld [vmem:[#allocation7 + $0x30] sm:$0xff]
    %v222 = vld [vmem:[#allocation7 + $0x38] sm:$0xff]
    %v223 = vld [vmem:[#allocation7 + $0x40] sm:$0xff]
    %v224 = vld [vmem:[#allocation7 + $0x48] sm:$0xff]
    %v225 = vld [vmem:[#allocation7 + $0x50] sm:$0xff]
    %v226 = vld [vmem:[#allocation7 + $0x58] sm:$0xff]
    %v227 = vld [vmem:[#allocation7 + $0x60] sm:$0xff]
    %v228 = vld [vmem:[#allocation7 + $0x68] sm:$0xff]
    %v229 = vld [vmem:[#allocation7 + $0x70] sm:$0xff]
    %v230 = vld [vmem:[#allocation7 + $0x78] sm:$0xff]
    %231 = vmatprep.subr.mxu0 0.0
    %232 = vmatpush1.msra.mxu0 %v230
    %233 = vmatprep.subr.mxu0 0.0
    %234 = vmatpush1.msra.mxu0 %v229
    %235 = vmatprep.subr.mxu0 0.0
    %236 = vmatpush1.msra.mxu0 %v228
    %237 = vmatprep.subr.mxu0 0.0
    %238 = vmatpush1.msra.mxu0 %v227
    %239 = vmatprep.subr.mxu0 0.0
    %240 = vmatpush1.msra.mxu0 %v226
    %241 = vmatprep.subr.mxu0 0.0
    %242 = vmatpush1.msra.mxu0 %v225
    %243 = vmatprep.subr.mxu0 0.0
    %244 = vmatpush1.msra.mxu0 %v224
    %245 = vmatprep.subr.mxu0 0.0
    %246 = vmatpush1.msra.mxu0 %v223
    %247 = vmatprep.subr.mxu0 0.0
    %248 = vmatpush1.msra.mxu0 %v222
    %249 = vmatprep.subr.mxu0 0.0
    %250 = vmatpush1.msra.mxu0 %v221
    %251 = vmatprep.subr.mxu0 0.0
    %252 = vmatpush1.msra.mxu0 %v220
    %253 = vmatprep.subr.mxu0 0.0
    %254 = vmatpush1.msra.mxu0 %v219
    %255 = vmatprep.subr.mxu0 0.0
    %256 = vmatpush1.msra.mxu0 %v218
    %257 = vmatprep.subr.mxu0 0.0
    %258 = vmatpush1.msra.mxu0 %v217
    %259 = vmatprep.subr.mxu0 0.0
    %260 = vmatpush1.msra.mxu0 %v216
    %261 = vmatprep.subr.mxu0 0.0
    %262 = vmatpush1.msra.mxu0 %v215
    %263 = vmatprep.subr.mxu0 0.0
    %264 = vmatpush2.msra.mxu0 0.0
    %265 = vmatprep.subr.mxu0 0.0
    %266 = vmatpush2.msra.mxu0 0.0
    %267 = vmatprep.subr.mxu0 0.0
    %268 = vmatpush2.msra.mxu0 0.0
    %269 = vmatprep.subr.mxu0 0.0
    %270 = vmatpush2.msra.mxu0 0.0
    %271 = vmatprep.subr.mxu0 0.0
    %272 = vmatpush2.msra.mxu0 0.0
    %273 = vmatprep.subr.mxu0 0.0
    %274 = vmatpush2.msra.mxu0 0.0
    %275 = vmatprep.subr.mxu0 0.0
    %276 = vmatpush2.msra.mxu0 0.0
    %277 = vmatprep.subr.mxu0 0.0
    %278 = vmatpush2.msra.mxu0 0.0
    %279 = vmatprep.subr.mxu0 0.0
    %280 = vmatpush2.msra.mxu0 0.0
    %281 = vmatprep.subr.mxu0 0.0
    %282 = vmatpush2.msra.mxu0 0.0
    %283 = vmatprep.subr.mxu0 0.0
    %284 = vmatpush2.msra.mxu0 0.0
    %285 = vmatprep.subr.mxu0 0.0
    %286 = vmatpush2.msra.mxu0 0.0
    %287 = vmatprep.subr.mxu0 0.0
    %288 = vmatpush2.msra.mxu0 0.0
    %289 = vmatprep.subr.mxu0 0.0
    %290 = vmatpush2.msra.mxu0 0.0
    %291 = vmatprep.subr.mxu0 0.0
    %292 = vmatpush2.msra.mxu0 0.0
    %293 = vmatprep.subr.mxu0 0.0
    %294 = vmatpush2.msra.mxu0 0.0
    %295 = vmatprep.mubr.f32.mxu0 0.0
    %296 = vmatmul.mubr.f32.gmra.mxu0 0.0
    %v297 = vpop.f32.mrf.mxu0
    %v298 = vadd.f32 0.0, %v297
    %v299 = vpop.f32.mrf.mxu0
    %300 = vdwg.mxu0
    %v302 = vrot.slane %v298, 1
    %v303 = vrot.slane %v298, 2
    %v304 = vrot.slane %v298, 3
    %v305 = vrot.slane %v298, 4
    %v306 = vrot.slane %v298, 5
    %v307 = vrot.slane %v298, 6
    %v308 = vrot.slane %v298, 7
    %v317 = vadd.f32 %v177, %v298
    %v318 = vadd.f32 %v182, %v302
    %v319 = vadd.f32 %v187, %v303
    %v320 = vadd.f32 %v192, %v304
    %v321 = vadd.f32 %v197, %v305
    %v322 = vadd.f32 %v202, %v306
    %v323 = vadd.f32 %v207, %v307
    %v324 = vadd.f32 %v212, %v308
    %v325 = vtanh.pop %v317
    %v326 = vtanh.pop %v318
    %v327 = vtanh.pop %v319
    %v328 = vtanh.pop %v320
    %v329 = vtanh.pop %v321
    %v330 = vtanh.pop %v322
    %v331 = vtanh.pop %v323
    %v332 = vtanh.pop %v324
    %v341 = vrot.slane %v326, 7
    %vm342 = vcmask 1041409
    %v343 = vsel %vm342, %v341, %v325
    %v344 = vrot.slane %v327, 6
    %vm345 = vcmask 1042434
    %v346 = vsel %vm345, %v344, %v343
    %v347 = vrot.slane %v328, 5
    %vm348 = vcmask 1043459
    %v349 = vsel %vm348, %v347, %v346
    %v350 = vrot.slane %v329, 4
    %vm351 = vcmask 1044484
    %v352 = vsel %vm351, %v350, %v349
    %v353 = vrot.slane %v330, 3
    %vm354 = vcmask 1045509
    %v355 = vsel %vm354, %v353, %v352
    %v356 = vrot.slane %v331, 2
    %vm357 = vcmask 1046534
    %v358 = vsel %vm357, %v356, %v355
    %v359 = vrot.slane %v332, 1
    %vm360 = vcmask 1047559
    %v361 = vsel %vm360, %v359, %v358
    %363 = vmatprep.subr.mxu0 0.0
    %364 = vmatpush1.msra.mxu0 %v230
    %365 = vmatprep.subr.mxu0 0.0
    %366 = vmatpush1.msra.mxu0 %v229
    %367 = vmatprep.subr.mxu0 0.0
    %368 = vmatpush1.msra.mxu0 %v228
    %369 = vmatprep.subr.mxu0 0.0
    %370 = vmatpush1.msra.mxu0 %v227
    %371 = vmatprep.subr.mxu0 0.0
    %372 = vmatpush1.msra.mxu0 %v226
    %373 = vmatprep.subr.mxu0 0.0
    %374 = vmatpush1.msra.mxu0 %v225
    %375 = vmatprep.subr.mxu0 0.0
    %376 = vmatpush1.msra.mxu0 %v224
    %377 = vmatprep.subr.mxu0 0.0
    %378 = vmatpush1.msra.mxu0 %v223
    %379 = vmatprep.subr.mxu0 0.0
    %380 = vmatpush1.msra.mxu0 %v222
    %381 = vmatprep.subr.mxu0 0.0
    %382 = vmatpush1.msra.mxu0 %v221
    %383 = vmatprep.subr.mxu0 0.0
    %384 = vmatpush1.msra.mxu0 %v220
    %385 = vmatprep.subr.mxu0 0.0
    %386 = vmatpush1.msra.mxu0 %v219
    %387 = vmatprep.subr.mxu0 0.0
    %388 = vmatpush1.msra.mxu0 %v218
    %389 = vmatprep.subr.mxu0 0.0
    %390 = vmatpush1.msra.mxu0 %v217
    %391 = vmatprep.subr.mxu0 0.0
    %392 = vmatpush1.msra.mxu0 %v216
    %393 = vmatprep.subr.mxu0 0.0
    %394 = vmatpush1.msra.mxu0 %v215
    %395 = vmatprep.subr.mxu0 0.0
    %396 = vmatpush2.msra.mxu0 0.0
    %397 = vmatprep.subr.mxu0 0.0
    %398 = vmatpush2.msra.mxu0 0.0
    %399 = vmatprep.subr.mxu0 0.0
    %400 = vmatpush2.msra.mxu0 0.0
    %401 = vmatprep.subr.mxu0 0.0
    %402 = vmatpush2.msra.mxu0 0.0
    %403 = vmatprep.subr.mxu0 0.0
    %404 = vmatpush2.msra.mxu0 0.0
    %405 = vmatprep.subr.mxu0 0.0
    %406 = vmatpush2.msra.mxu0 0.0
    %407 = vmatprep.subr.mxu0 0.0
    %408 = vmatpush2.msra.mxu0 0.0
    %409 = vmatprep.subr.mxu0 0.0
    %410 = vmatpush2.msra.mxu0 0.0
    %411 = vmatprep.subr.mxu0 0.0
    %412 = vmatpush2.msra.mxu0 0.0
    %413 = vmatprep.subr.mxu0 0.0
    %414 = vmatpush2.msra.mxu0 0.0
    %415 = vmatprep.subr.mxu0 0.0
    %416 = vmatpush2.msra.mxu0 0.0
    %417 = vmatprep.subr.mxu0 0.0
    %418 = vmatpush2.msra.mxu0 0.0
    %419 = vmatprep.subr.mxu0 0.0
    %420 = vmatpush2.msra.mxu0 0.0
    %421 = vmatprep.subr.mxu0 0.0
    %422 = vmatpush2.msra.mxu0 0.0
    %423 = vmatprep.subr.mxu0 0.0
    %424 = vmatpush2.msra.mxu0 0.0
    %425 = vmatprep.subr.mxu0 0.0
    %426 = vmatpush2.msra.mxu0 0.0
    %427 = vmatprep.mubr.f32.mxu0 0.0
    %428 = vmatmul.mubr.f32.gmra.mxu0 %v361
    %v429 = vpop.f32.mrf.mxu0
    %v430 = vadd.f32 0.0, %v429
    %v431 = vpop.f32.mrf.mxu0
    %432 = vdwg.mxu0
    %v434 = vrot.slane %v430, 7
    %v435 = vrot.slane %v430, 1
    %v436 = vrot.slane %v430, 2
    %v437 = vrot.slane %v430, 3
    %v438 = vrot.slane %v430, 4
    %v439 = vrot.slane %v430, 5
    %v440 = vrot.slane %v430, 6
    %v449 = vadd.f32 %v177, %v434
    %v450 = vadd.f32 %v182, %v430
    %v451 = vadd.f32 %v187, %v435
    %v452 = vadd.f32 %v192, %v436
    %v453 = vadd.f32 %v197, %v437
    %v454 = vadd.f32 %v202, %v438
    %v455 = vadd.f32 %v207, %v439
    %v456 = vadd.f32 %v212, %v440
    %v457 = vtanh.pop %v449
    %v458 = vtanh.pop %v450
    %v459 = vtanh.pop %v451
    %v460 = vtanh.pop %v452
    %v461 = vtanh.pop %v453
    %v462 = vtanh.pop %v454
    %v463 = vtanh.pop %v455
    %v464 = vtanh.pop %v456
    %v473 = vrot.slane %v457, 1
    %v474 = vsel %vm342, %v458, %v473
    %v475 = vrot.slane %v459, 7
    %v476 = vsel %vm345, %v475, %v474
    %v477 = vrot.slane %v460, 6
    %v478 = vsel %vm348, %v477, %v476
    %v479 = vrot.slane %v461, 5
    %v480 = vsel %vm351, %v479, %v478
    %v481 = vrot.slane %v462, 4
    %v482 = vsel %vm354, %v481, %v480
    %v483 = vrot.slane %v463, 3
    %v484 = vsel %vm357, %v483, %v482
    %v485 = vrot.slane %v464, 2
    %v486 = vsel %vm360, %v485, %v484
    %488 = vmatprep.subr.mxu0 0.0
    %489 = vmatpush1.msra.mxu0 %v230
    %490 = vmatprep.subr.mxu0 0.0
    %491 = vmatpush1.msra.mxu0 %v229
    %492 = vmatprep.subr.mxu0 0.0
    %493 = vmatpush1.msra.mxu0 %v228
    %494 = vmatprep.subr.mxu0 0.0
    %495 = vmatpush1.msra.mxu0 %v227
    %496 = vmatprep.subr.mxu0 0.0
    %497 = vmatpush1.msra.mxu0 %v226
    %498 = vmatprep.subr.mxu0 0.0
    %499 = vmatpush1.msra.mxu0 %v225
    %500 = vmatprep.subr.mxu0 0.0
    %501 = vmatpush1.msra.mxu0 %v224
    %502 = vmatprep.subr.mxu0 0.0
    %503 = vmatpush1.msra.mxu0 %v223
    %504 = vmatprep.subr.mxu0 0.0
    %505 = vmatpush1.msra.mxu0 %v222
    %506 = vmatprep.subr.mxu0 0.0
    %507 = vmatpush1.msra.mxu0 %v221
    %508 = vmatprep.subr.mxu0 0.0
    %509 = vmatpush1.msra.mxu0 %v220
    %510 = vmatprep.subr.mxu0 0.0
    %511 = vmatpush1.msra.mxu0 %v219
    %512 = vmatprep.subr.mxu0 0.0
    %513 = vmatpush1.msra.mxu0 %v218
    %514 = vmatprep.subr.mxu0 0.0
    %515 = vmatpush1.msra.mxu0 %v217
    %516 = vmatprep.subr.mxu0 0.0
    %517 = vmatpush1.msra.mxu0 %v216
    %518 = vmatprep.subr.mxu0 0.0
    %519 = vmatpush1.msra.mxu0 %v215
    %520 = vmatprep.subr.mxu0 0.0
    %521 = vmatpush2.msra.mxu0 0.0
    %522 = vmatprep.subr.mxu0 0.0
    %523 = vmatpush2.msra.mxu0 0.0
    %524 = vmatprep.subr.mxu0 0.0
    %525 = vmatpush2.msra.mxu0 0.0
    %526 = vmatprep.subr.mxu0 0.0
    %527 = vmatpush2.msra.mxu0 0.0
    %528 = vmatprep.subr.mxu0 0.0
    %529 = vmatpush2.msra.mxu0 0.0
    %530 = vmatprep.subr.mxu0 0.0
    %531 = vmatpush2.msra.mxu0 0.0
    %532 = vmatprep.subr.mxu0 0.0
    %533 = vmatpush2.msra.mxu0 0.0
    %534 = vmatprep.subr.mxu0 0.0
    %535 = vmatpush2.msra.mxu0 0.0
    %536 = vmatprep.subr.mxu0 0.0
    %537 = vmatpush2.msra.mxu0 0.0
    %538 = vmatprep.subr.mxu0 0.0
    %539 = vmatpush2.msra.mxu0 0.0
    %540 = vmatprep.subr.mxu0 0.0
    %541 = vmatpush2.msra.mxu0 0.0
    %542 = vmatprep.subr.mxu0 0.0
    %543 = vmatpush2.msra.mxu0 0.0
    %544 = vmatprep.subr.mxu0 0.0
    %545 = vmatpush2.msra.mxu0 0.0
    %546 = vmatprep.subr.mxu0 0.0
    %547 = vmatpush2.msra.mxu0 0.0
    %548 = vmatprep.subr.mxu0 0.0
    %549 = vmatpush2.msra.mxu0 0.0
    %550 = vmatprep.subr.mxu0 0.0
    %551 = vmatpush2.msra.mxu0 0.0
    %552 = vmatprep.mubr.f32.mxu0 0.0
    %553 = vmatmul.mubr.f32.gmra.mxu0 %v486
    %v554 = vpop.f32.mrf.mxu0
    %v555 = vadd.f32 0.0, %v554
    %v556 = vpop.f32.mrf.mxu0
    %557 = vdwg.mxu0
    %v559 = vrot.slane %v555, 6
    %v560 = vrot.slane %v555, 7
    %v561 = vrot.slane %v555, 1
    %v562 = vrot.slane %v555, 2
    %v563 = vrot.slane %v555, 3
    %v564 = vrot.slane %v555, 4
    %v565 = vrot.slane %v555, 5
    %v574 = vadd.f32 %v177, %v559
    %v575 = vadd.f32 %v182, %v560
    %v576 = vadd.f32 %v187, %v555
    %v577 = vadd.f32 %v192, %v561
    %v578 = vadd.f32 %v197, %v562
    %v579 = vadd.f32 %v202, %v563
    %v580 = vadd.f32 %v207, %v564
    %v581 = vadd.f32 %v212, %v565
    %v582 = vtanh.pop %v574
    %v583 = vtanh.pop %v575
    %v584 = vtanh.pop %v576
    %v585 = vtanh.pop %v577
    %v586 = vtanh.pop %v578
    %v587 = vtanh.pop %v579
    %v588 = vtanh.pop %v580
    %v589 = vtanh.pop %v581
    %v598 = vrot.slane %v582, 2
    %v599 = vrot.slane %v583, 1
    %v600 = vsel %vm342, %v599, %v598
    %v601 = vsel %vm345, %v584, %v600
    %v602 = vrot.slane %v585, 7
    %v603 = vsel %vm348, %v602, %v601
    %v604 = vrot.slane %v586, 6
    %v605 = vsel %vm351, %v604, %v603
    %v606 = vrot.slane %v587, 5
    %v607 = vsel %vm354, %v606, %v605
    %v608 = vrot.slane %v588, 4
    %v609 = vsel %vm357, %v608, %v607
    %v610 = vrot.slane %v589, 3
    %v611 = vsel %vm360, %v610, %v609
    %613 = vmatprep.subr.mxu0 0.0
    %614 = vmatpush1.msra.mxu0 %v230
    %615 = vmatprep.subr.mxu0 0.0
    %616 = vmatpush1.msra.mxu0 %v229
    %617 = vmatprep.subr.mxu0 0.0
    %618 = vmatpush1.msra.mxu0 %v228
    %619 = vmatprep.subr.mxu0 0.0
    %620 = vmatpush1.msra.mxu0 %v227
    %621 = vmatprep.subr.mxu0 0.0
    %622 = vmatpush1.msra.mxu0 %v226
    %623 = vmatprep.subr.mxu0 0.0
    %624 = vmatpush1.msra.mxu0 %v225
    %625 = vmatprep.subr.mxu0 0.0
    %626 = vmatpush1.msra.mxu0 %v224
    %627 = vmatprep.subr.mxu0 0.0
    %628 = vmatpush1.msra.mxu0 %v223
    %629 = vmatprep.subr.mxu0 0.0
    %630 = vmatpush1.msra.mxu0 %v222
    %631 = vmatprep.subr.mxu0 0.0
    %632 = vmatpush1.msra.mxu0 %v221
    %633 = vmatprep.subr.mxu0 0.0
    %634 = vmatpush1.msra.mxu0 %v220
    %635 = vmatprep.subr.mxu0 0.0
    %636 = vmatpush1.msra.mxu0 %v219
    %637 = vmatprep.subr.mxu0 0.0
    %638 = vmatpush1.msra.mxu0 %v218
    %639 = vmatprep.subr.mxu0 0.0
    %640 = vmatpush1.msra.mxu0 %v217
    %641 = vmatprep.subr.mxu0 0.0
    %642 = vmatpush1.msra.mxu0 %v216
    %643 = vmatprep.subr.mxu0 0.0
    %644 = vmatpush1.msra.mxu0 %v215
    %645 = vmatprep.subr.mxu0 0.0
    %646 = vmatpush2.msra.mxu0 0.0
    %647 = vmatprep.subr.mxu0 0.0
    %648 = vmatpush2.msra.mxu0 0.0
    %649 = vmatprep.subr.mxu0 0.0
    %650 = vmatpush2.msra.mxu0 0.0
    %651 = vmatprep.subr.mxu0 0.0
    %652 = vmatpush2.msra.mxu0 0.0
    %653 = vmatprep.subr.mxu0 0.0
    %654 = vmatpush2.msra.mxu0 0.0
    %655 = vmatprep.subr.mxu0 0.0
    %656 = vmatpush2.msra.mxu0 0.0
    %657 = vmatprep.subr.mxu0 0.0
    %658 = vmatpush2.msra.mxu0 0.0
    %659 = vmatprep.subr.mxu0 0.0
    %660 = vmatpush2.msra.mxu0 0.0
    %661 = vmatprep.subr.mxu0 0.0
    %662 = vmatpush2.msra.mxu0 0.0
    %663 = vmatprep.subr.mxu0 0.0
    %664 = vmatpush2.msra.mxu0 0.0
    %665 = vmatprep.subr.mxu0 0.0
    %666 = vmatpush2.msra.mxu0 0.0
    %667 = vmatprep.subr.mxu0 0.0
    %668 = vmatpush2.msra.mxu0 0.0
    %669 = vmatprep.subr.mxu0 0.0
    %670 = vmatpush2.msra.mxu0 0.0
    %671 = vmatprep.subr.mxu0 0.0
    %672 = vmatpush2.msra.mxu0 0.0
    %673 = vmatprep.subr.mxu0 0.0
    %674 = vmatpush2.msra.mxu0 0.0
    %675 = vmatprep.subr.mxu0 0.0
    %676 = vmatpush2.msra.mxu0 0.0
    %677 = vmatprep.mubr.f32.mxu0 0.0
    %678 = vmatmul.mubr.f32.gmra.mxu0 %v611
    %v679 = vpop.f32.mrf.mxu0
    %v680 = vadd.f32 0.0, %v679
    %v681 = vpop.f32.mrf.mxu0
    %682 = vdwg.mxu0
    %v684 = vrot.slane %v680, 5
    %v685 = vrot.slane %v680, 6
    %v686 = vrot.slane %v680, 7
    %v687 = vrot.slane %v680, 1
    %v688 = vrot.slane %v680, 2
    %v689 = vrot.slane %v680, 3
    %v690 = vrot.slane %v680, 4
    %v699 = vadd.f32 %v177, %v684
    %v700 = vadd.f32 %v182, %v685
    %v701 = vadd.f32 %v187, %v686
    %v702 = vadd.f32 %v192, %v680
    %v703 = vadd.f32 %v197, %v687
    %v704 = vadd.f32 %v202, %v688
    %v705 = vadd.f32 %v207, %v689
    %v706 = vadd.f32 %v212, %v690
    %v707 = vtanh.pop %v699
    %v708 = vtanh.pop %v700
    %v709 = vtanh.pop %v701
    %v710 = vtanh.pop %v702
    %v711 = vtanh.pop %v703
    %v712 = vtanh.pop %v704
    %v713 = vtanh.pop %v705
    %v714 = vtanh.pop %v706
    %v723 = vrot.slane %v707, 3
    %v724 = vrot.slane %v708, 2
    %v725 = vsel %vm342, %v724, %v723
    %v726 = vrot.slane %v709, 1
    %v727 = vsel %vm345, %v726, %v725
    %v728 = vsel %vm348, %v710, %v727
    %v729 = vrot.slane %v711, 7
    %v730 = vsel %vm351, %v729, %v728
    %v731 = vrot.slane %v712, 6
    %v732 = vsel %vm354, %v731, %v730
    %v733 = vrot.slane %v713, 5
    %v734 = vsel %vm357, %v733, %v732
    %v735 = vrot.slane %v714, 4
    %v736 = vsel %vm360, %v735, %v734
    %738 = vmatprep.subr.mxu0 0.0
    %739 = vmatpush1.msra.mxu0 %v230
    %740 = vmatprep.subr.mxu0 0.0
    %741 = vmatpush1.msra.mxu0 %v229
    %742 = vmatprep.subr.mxu0 0.0
    %743 = vmatpush1.msra.mxu0 %v228
    %744 = vmatprep.subr.mxu0 0.0
    %745 = vmatpush1.msra.mxu0 %v227
    %746 = vmatprep.subr.mxu0 0.0
    %747 = vmatpush1.msra.mxu0 %v226
    %748 = vmatprep.subr.mxu0 0.0
    %749 = vmatpush1.msra.mxu0 %v225
    %750 = vmatprep.subr.mxu0 0.0
    %751 = vmatpush1.msra.mxu0 %v224
    %752 = vmatprep.subr.mxu0 0.0
    %753 = vmatpush1.msra.mxu0 %v223
    %754 = vmatprep.subr.mxu0 0.0
    %755 = vmatpush1.msra.mxu0 %v222
    %756 = vmatprep.subr.mxu0 0.0
    %757 = vmatpush1.msra.mxu0 %v221
    %758 = vmatprep.subr.mxu0 0.0
    %759 = vmatpush1.msra.mxu0 %v220
    %760 = vmatprep.subr.mxu0 0.0
    %761 = vmatpush1.msra.mxu0 %v219
    %762 = vmatprep.subr.mxu0 0.0
    %763 = vmatpush1.msra.mxu0 %v218
    %764 = vmatprep.subr.mxu0 0.0
    %765 = vmatpush1.msra.mxu0 %v217
    %766 = vmatprep.subr.mxu0 0.0
    %767 = vmatpush1.msra.mxu0 %v216
    %768 = vmatprep.subr.mxu0 0.0
    %769 = vmatpush1.msra.mxu0 %v215
    %770 = vmatprep.subr.mxu0 0.0
    %771 = vmatpush2.msra.mxu0 0.0
    %772 = vmatprep.subr.mxu0 0.0
    %773 = vmatpush2.msra.mxu0 0.0
    %774 = vmatprep.subr.mxu0 0.0
    %775 = vmatpush2.msra.mxu0 0.0
    %776 = vmatprep.subr.mxu0 0.0
    %777 = vmatpush2.msra.mxu0 0.0
    %778 = vmatprep.subr.mxu0 0.0
    %779 = vmatpush2.msra.mxu0 0.0
    %780 = vmatprep.subr.mxu0 0.0
    %781 = vmatpush2.msra.mxu0 0.0
    %782 = vmatprep.subr.mxu0 0.0
    %783 = vmatpush2.msra.mxu0 0.0
    %784 = vmatprep.subr.mxu0 0.0
    %785 = vmatpush2.msra.mxu0 0.0
    %786 = vmatprep.subr.mxu0 0.0
    %787 = vmatpush2.msra.mxu0 0.0
    %788 = vmatprep.subr.mxu0 0.0
    %789 = vmatpush2.msra.mxu0 0.0
    %790 = vmatprep.subr.mxu0 0.0
    %791 = vmatpush2.msra.mxu0 0.0
    %792 = vmatprep.subr.mxu0 0.0
    %793 = vmatpush2.msra.mxu0 0.0
    %794 = vmatprep.subr.mxu0 0.0
    %795 = vmatpush2.msra.mxu0 0.0
    %796 = vmatprep.subr.mxu0 0.0
    %797 = vmatpush2.msra.mxu0 0.0
    %798 = vmatprep.subr.mxu0 0.0
    %799 = vmatpush2.msra.mxu0 0.0
    %800 = vmatprep.subr.mxu0 0.0
    %801 = vmatpush2.msra.mxu0 0.0
    %802 = vmatprep.mubr.f32.mxu0 0.0
    %803 = vmatmul.mubr.f32.gmra.mxu0 %v736
    %v804 = vpop.f32.mrf.mxu0
    %v805 = vadd.f32 0.0, %v804
    %v806 = vpop.f32.mrf.mxu0
    %807 = vdwg.mxu0
    %v809 = vrot.slane %v805, 4
    %v810 = vrot.slane %v805, 5
    %v811 = vrot.slane %v805, 6
    %v812 = vrot.slane %v805, 7
    %v813 = vrot.slane %v805, 1
    %v814 = vrot.slane %v805, 2
    %v815 = vrot.slane %v805, 3
    %v824 = vadd.f32 %v177, %v809
    %v825 = vadd.f32 %v182, %v810
    %v826 = vadd.f32 %v187, %v811
    %v827 = vadd.f32 %v192, %v812
    %v828 = vadd.f32 %v197, %v805
    %v829 = vadd.f32 %v202, %v813
    %v830 = vadd.f32 %v207, %v814
    %v831 = vadd.f32 %v212, %v815
    %v832 = vtanh.pop %v824
    %v833 = vtanh.pop %v825
    %v834 = vtanh.pop %v826
    %v835 = vtanh.pop %v827
    %v836 = vtanh.pop %v828
    %v837 = vtanh.pop %v829
    %v838 = vtanh.pop %v830
    %v839 = vtanh.pop %v831
    %v848 = vrot.slane %v832, 4
    %v849 = vrot.slane %v833, 3
    %v850 = vsel %vm342, %v849, %v848
    %v851 = vrot.slane %v834, 2
    %v852 = vsel %vm345, %v851, %v850
    %v853 = vrot.slane %v835, 1
    %v854 = vsel %vm348, %v853, %v852
    %v855 = vsel %vm351, %v836, %v854
    %v856 = vrot.slane %v837, 7
    %v857 = vsel %vm354, %v856, %v855
    %v858 = vrot.slane %v838, 6
    %v859 = vsel %vm357, %v858, %v857
    %v860 = vrot.slane %v839, 5
    %v861 = vsel %vm360, %v860, %v859
    %863 = vmatprep.subr.mxu0 0.0
    %864 = vmatpush1.msra.mxu0 %v230
    %865 = vmatprep.subr.mxu0 0.0
    %866 = vmatpush1.msra.mxu0 %v229
    %867 = vmatprep.subr.mxu0 0.0
    %868 = vmatpush1.msra.mxu0 %v228
    %869 = vmatprep.subr.mxu0 0.0
    %870 = vmatpush1.msra.mxu0 %v227
    %871 = vmatprep.subr.mxu0 0.0
    %872 = vmatpush1.msra.mxu0 %v226
    %873 = vmatprep.subr.mxu0 0.0
    %874 = vmatpush1.msra.mxu0 %v225
    %875 = vmatprep.subr.mxu0 0.0
    %876 = vmatpush1.msra.mxu0 %v224
    %877 = vmatprep.subr.mxu0 0.0
    %878 = vmatpush1.msra.mxu0 %v223
    %879 = vmatprep.subr.mxu0 0.0
    %880 = vmatpush1.msra.mxu0 %v222
    %881 = vmatprep.subr.mxu0 0.0
    %882 = vmatpush1.msra.mxu0 %v221
    %883 = vmatprep.subr.mxu0 0.0
    %884 = vmatpush1.msra.mxu0 %v220
    %885 = vmatprep.subr.mxu0 0.0
    %886 = vmatpush1.msra.mxu0 %v219
    %887 = vmatprep.subr.mxu0 0.0
    %888 = vmatpush1.msra.mxu0 %v218
    %889 = vmatprep.subr.mxu0 0.0
    %890 = vmatpush1.msra.mxu0 %v217
    %891 = vmatprep.subr.mxu0 0.0
    %892 = vmatpush1.msra.mxu0 %v216
    %893 = vmatprep.subr.mxu0 0.0
    %894 = vmatpush1.msra.mxu0 %v215
    %895 = vmatprep.subr.mxu0 0.0
    %896 = vmatpush2.msra.mxu0 0.0
    %897 = vmatprep.subr.mxu0 0.0
    %898 = vmatpush2.msra.mxu0 0.0
    %899 = vmatprep.subr.mxu0 0.0
    %900 = vmatpush2.msra.mxu0 0.0
    %901 = vmatprep.subr.mxu0 0.0
    %902 = vmatpush2.msra.mxu0 0.0
    %903 = vmatprep.subr.mxu0 0.0
    %904 = vmatpush2.msra.mxu0 0.0
    %905 = vmatprep.subr.mxu0 0.0
    %906 = vmatpush2.msra.mxu0 0.0
    %907 = vmatprep.subr.mxu0 0.0
    %908 = vmatpush2.msra.mxu0 0.0
    %909 = vmatprep.subr.mxu0 0.0
    %910 = vmatpush2.msra.mxu0 0.0
    %911 = vmatprep.subr.mxu0 0.0
    %912 = vmatpush2.msra.mxu0 0.0
    %913 = vmatprep.subr.mxu0 0.0
    %914 = vmatpush2.msra.mxu0 0.0
    %915 = vmatprep.subr.mxu0 0.0
    %916 = vmatpush2.msra.mxu0 0.0
    %917 = vmatprep.subr.mxu0 0.0
    %918 = vmatpush2.msra.mxu0 0.0
    %919 = vmatprep.subr.mxu0 0.0
    %920 = vmatpush2.msra.mxu0 0.0
    %921 = vmatprep.subr.mxu0 0.0
    %922 = vmatpush2.msra.mxu0 0.0
    %923 = vmatprep.subr.mxu0 0.0
    %924 = vmatpush2.msra.mxu0 0.0
    %925 = vmatprep.subr.mxu0 0.0
    %926 = vmatpush2.msra.mxu0 0.0
    %927 = vmatprep.mubr.f32.mxu0 0.0
    %928 = vmatmul.mubr.f32.gmra.mxu0 %v861
    %v929 = vpop.f32.mrf.mxu0
    %v930 = vadd.f32 0.0, %v929
    %v931 = vpop.f32.mrf.mxu0
    %932 = vdwg.mxu0
    %v934 = vrot.slane %v930, 3
    %v935 = vrot.slane %v930, 4
    %v936 = vrot.slane %v930, 5
    %v937 = vrot.slane %v930, 6
    %v938 = vrot.slane %v930, 7
    %v939 = vrot.slane %v930, 1
    %v940 = vrot.slane %v930, 2
    %v949 = vadd.f32 %v177, %v934
    %v950 = vadd.f32 %v182, %v935
    %v951 = vadd.f32 %v187, %v936
    %v952 = vadd.f32 %v192, %v937
    %v953 = vadd.f32 %v197, %v938
    %v954 = vadd.f32 %v202, %v930
    %v955 = vadd.f32 %v207, %v939
    %v956 = vadd.f32 %v212, %v940
    %v957 = vtanh.pop %v949
    %v958 = vtanh.pop %v950
    %v959 = vtanh.pop %v951
    %v960 = vtanh.pop %v952
    %v961 = vtanh.pop %v953
    %v962 = vtanh.pop %v954
    %v963 = vtanh.pop %v955
    %v964 = vtanh.pop %v956
    %v973 = vrot.slane %v957, 5
    %v974 = vrot.slane %v958, 4
    %v975 = vsel %vm342, %v974, %v973
    %v976 = vrot.slane %v959, 3
    %v977 = vsel %vm345, %v976, %v975
    %v978 = vrot.slane %v960, 2
    %v979 = vsel %vm348, %v978, %v977
    %v980 = vrot.slane %v961, 1
    %v981 = vsel %vm351, %v980, %v979
    %v982 = vsel %vm354, %v962, %v981
    %v983 = vrot.slane %v963, 7
    %v984 = vsel %vm357, %v983, %v982
    %v985 = vrot.slane %v964, 6
    %v986 = vsel %vm360, %v985, %v984
    %988 = vmatprep.subr.mxu0 0.0
    %989 = vmatpush1.msra.mxu0 %v230
    %990 = vmatprep.subr.mxu0 0.0
    %991 = vmatpush1.msra.mxu0 %v229
    %992 = vmatprep.subr.mxu0 0.0
    %993 = vmatpush1.msra.mxu0 %v228
    %994 = vmatprep.subr.mxu0 0.0
    %995 = vmatpush1.msra.mxu0 %v227
    %996 = vmatprep.subr.mxu0 0.0
    %997 = vmatpush1.msra.mxu0 %v226
    %998 = vmatprep.subr.mxu0 0.0
    %999 = vmatpush1.msra.mxu0 %v225
    %1000 = vmatprep.subr.mxu0 0.0
    %1001 = vmatpush1.msra.mxu0 %v224
    %1002 = vmatprep.subr.mxu0 0.0
    %1003 = vmatpush1.msra.mxu0 %v223
    %1004 = vmatprep.subr.mxu0 0.0
    %1005 = vmatpush1.msra.mxu0 %v222
    %1006 = vmatprep.subr.mxu0 0.0
    %1007 = vmatpush1.msra.mxu0 %v221
    %1008 = vmatprep.subr.mxu0 0.0
    %1009 = vmatpush1.msra.mxu0 %v220
    %1010 = vmatprep.subr.mxu0 0.0
    %1011 = vmatpush1.msra.mxu0 %v219
    %1012 = vmatprep.subr.mxu0 0.0
    %1013 = vmatpush1.msra.mxu0 %v218
    %1014 = vmatprep.subr.mxu0 0.0
    %1015 = vmatpush1.msra.mxu0 %v217
    %1016 = vmatprep.subr.mxu0 0.0
    %1017 = vmatpush1.msra.mxu0 %v216
    %1018 = vmatprep.subr.mxu0 0.0
    %1019 = vmatpush1.msra.mxu0 %v215
    %1020 = vmatprep.subr.mxu0 0.0
    %1021 = vmatpush2.msra.mxu0 0.0
    %1022 = vmatprep.subr.mxu0 0.0
    %1023 = vmatpush2.msra.mxu0 0.0
    %1024 = vmatprep.subr.mxu0 0.0
    %1025 = vmatpush2.msra.mxu0 0.0
    %1026 = vmatprep.subr.mxu0 0.0
    %1027 = vmatpush2.msra.mxu0 0.0
    %1028 = vmatprep.subr.mxu0 0.0
    %1029 = vmatpush2.msra.mxu0 0.0
    %1030 = vmatprep.subr.mxu0 0.0
    %1031 = vmatpush2.msra.mxu0 0.0
    %1032 = vmatprep.subr.mxu0 0.0
    %1033 = vmatpush2.msra.mxu0 0.0
    %1034 = vmatprep.subr.mxu0 0.0
    %1035 = vmatpush2.msra.mxu0 0.0
    %1036 = vmatprep.subr.mxu0 0.0
    %1037 = vmatpush2.msra.mxu0 0.0
    %1038 = vmatprep.subr.mxu0 0.0
    %1039 = vmatpush2.msra.mxu0 0.0
    %1040 = vmatprep.subr.mxu0 0.0
    %1041 = vmatpush2.msra.mxu0 0.0
    %1042 = vmatprep.subr.mxu0 0.0
    %1043 = vmatpush2.msra.mxu0 0.0
    %1044 = vmatprep.subr.mxu0 0.0
    %1045 = vmatpush2.msra.mxu0 0.0
    %1046 = vmatprep.subr.mxu0 0.0
    %1047 = vmatpush2.msra.mxu0 0.0
    %1048 = vmatprep.subr.mxu0 0.0
    %1049 = vmatpush2.msra.mxu0 0.0
    %1050 = vmatprep.subr.mxu0 0.0
    %1051 = vmatpush2.msra.mxu0 0.0
    %1052 = vmatprep.mubr.f32.mxu0 0.0
    %1053 = vmatmul.mubr.f32.gmra.mxu0 %v986
    %v1054 = vpop.f32.mrf.mxu0
    %v1055 = vadd.f32 0.0, %v1054
    %v1056 = vpop.f32.mrf.mxu0
    %1057 = vdwg.mxu0
    %v1059 = vrot.slane %v1055, 2
    %v1060 = vrot.slane %v1055, 3
    %v1061 = vrot.slane %v1055, 4
    %v1062 = vrot.slane %v1055, 5
    %v1063 = vrot.slane %v1055, 6
    %v1064 = vrot.slane %v1055, 7
    %v1065 = vrot.slane %v1055, 1
    %v1074 = vadd.f32 %v177, %v1059
    %v1075 = vadd.f32 %v182, %v1060
    %v1076 = vadd.f32 %v187, %v1061
    %v1077 = vadd.f32 %v192, %v1062
    %v1078 = vadd.f32 %v197, %v1063
    %v1079 = vadd.f32 %v202, %v1064
    %v1080 = vadd.f32 %v207, %v1055
    %v1081 = vadd.f32 %v212, %v1065
    %v1082 = vtanh.pop %v1074
    %v1083 = vtanh.pop %v1075
    %v1084 = vtanh.pop %v1076
    %v1085 = vtanh.pop %v1077
    %v1086 = vtanh.pop %v1078
    %v1087 = vtanh.pop %v1079
    %v1088 = vtanh.pop %v1080
    %v1089 = vtanh.pop %v1081
    %v1098 = vrot.slane %v1082, 6
    %v1099 = vrot.slane %v1083, 5
    %v1100 = vsel %vm342, %v1099, %v1098
    %v1101 = vrot.slane %v1084, 4
    %v1102 = vsel %vm345, %v1101, %v1100
    %v1103 = vrot.slane %v1085, 3
    %v1104 = vsel %vm348, %v1103, %v1102
    %v1105 = vrot.slane %v1086, 2
    %v1106 = vsel %vm351, %v1105, %v1104
    %v1107 = vrot.slane %v1087, 1
    %v1108 = vsel %vm354, %v1107, %v1106
    %v1109 = vsel %vm357, %v1088, %v1108
    %v1110 = vrot.slane %v1089, 7
    %v1111 = vsel %vm360, %v1110, %v1109
    %1113 = vmatprep.subr.mxu0 0.0
    %1114 = vmatpush1.msra.mxu0 %v230
    %1115 = vmatprep.subr.mxu0 0.0
    %1116 = vmatpush1.msra.mxu0 %v229
    %1117 = vmatprep.subr.mxu0 0.0
    %1118 = vmatpush1.msra.mxu0 %v228
    %1119 = vmatprep.subr.mxu0 0.0
    %1120 = vmatpush1.msra.mxu0 %v227
    %1121 = vmatprep.subr.mxu0 0.0
    %1122 = vmatpush1.msra.mxu0 %v226
    %1123 = vmatprep.subr.mxu0 0.0
    %1124 = vmatpush1.msra.mxu0 %v225
    %1125 = vmatprep.subr.mxu0 0.0
    %1126 = vmatpush1.msra.mxu0 %v224
    %1127 = vmatprep.subr.mxu0 0.0
    %1128 = vmatpush1.msra.mxu0 %v223
    %1129 = vmatprep.subr.mxu0 0.0
    %1130 = vmatpush1.msra.mxu0 %v222
    %1131 = vmatprep.subr.mxu0 0.0
    %1132 = vmatpush1.msra.mxu0 %v221
    %1133 = vmatprep.subr.mxu0 0.0
    %1134 = vmatpush1.msra.mxu0 %v220
    %1135 = vmatprep.subr.mxu0 0.0
    %1136 = vmatpush1.msra.mxu0 %v219
    %1137 = vmatprep.subr.mxu0 0.0
    %1138 = vmatpush1.msra.mxu0 %v218
    %1139 = vmatprep.subr.mxu0 0.0
    %1140 = vmatpush1.msra.mxu0 %v217
    %1141 = vmatprep.subr.mxu0 0.0
    %1142 = vmatpush1.msra.mxu0 %v216
    %1143 = vmatprep.subr.mxu0 0.0
    %1144 = vmatpush1.msra.mxu0 %v215
    %1145 = vmatprep.subr.mxu0 0.0
    %1146 = vmatpush2.msra.mxu0 0.0
    %1147 = vmatprep.subr.mxu0 0.0
    %1148 = vmatpush2.msra.mxu0 0.0
    %1149 = vmatprep.subr.mxu0 0.0
    %1150 = vmatpush2.msra.mxu0 0.0
    %1151 = vmatprep.subr.mxu0 0.0
    %1152 = vmatpush2.msra.mxu0 0.0
    %1153 = vmatprep.subr.mxu0 0.0
    %1154 = vmatpush2.msra.mxu0 0.0
    %1155 = vmatprep.subr.mxu0 0.0
    %1156 = vmatpush2.msra.mxu0 0.0
    %1157 = vmatprep.subr.mxu0 0.0
    %1158 = vmatpush2.msra.mxu0 0.0
    %1159 = vmatprep.subr.mxu0 0.0
    %1160 = vmatpush2.msra.mxu0 0.0
    %1161 = vmatprep.subr.mxu0 0.0
    %1162 = vmatpush2.msra.mxu0 0.0
    %1163 = vmatprep.subr.mxu0 0.0
    %1164 = vmatpush2.msra.mxu0 0.0
    %1165 = vmatprep.subr.mxu0 0.0
    %1166 = vmatpush2.msra.mxu0 0.0
    %1167 = vmatprep.subr.mxu0 0.0
    %1168 = vmatpush2.msra.mxu0 0.0
    %1169 = vmatprep.subr.mxu0 0.0
    %1170 = vmatpush2.msra.mxu0 0.0
    %1171 = vmatprep.subr.mxu0 0.0
    %1172 = vmatpush2.msra.mxu0 0.0
    %1173 = vmatprep.subr.mxu0 0.0
    %1174 = vmatpush2.msra.mxu0 0.0
    %1175 = vmatprep.subr.mxu0 0.0
    %1176 = vmatpush2.msra.mxu0 0.0
    %1177 = vmatprep.mubr.f32.mxu0 0.0
    %1178 = vmatmul.mubr.f32.gmra.mxu0 %v1111
    %v1179 = vpop.f32.mrf.mxu0
    %v1180 = vadd.f32 0.0, %v1179
    %v1181 = vpop.f32.mrf.mxu0
    %1182 = vdwg.mxu0
    %v1184 = vrot.slane %v1180, 1
    %v1185 = vrot.slane %v1180, 2
    %v1186 = vrot.slane %v1180, 3
    %v1187 = vrot.slane %v1180, 4
    %v1188 = vrot.slane %v1180, 5
    %v1189 = vrot.slane %v1180, 6
    %v1190 = vrot.slane %v1180, 7
    %v1199 = vadd.f32 %v177, %v1184
    %v1200 = vadd.f32 %v182, %v1185
    %v1201 = vadd.f32 %v187, %v1186
    %v1202 = vadd.f32 %v192, %v1187
    %v1203 = vadd.f32 %v197, %v1188
    %v1204 = vadd.f32 %v202, %v1189
    %v1205 = vadd.f32 %v207, %v1190
    %v1206 = vadd.f32 %v212, %v1180
    %v1207 = vtanh.pop %v1199
    %v1208 = vtanh.pop %v1200
    %v1209 = vtanh.pop %v1201
    %v1210 = vtanh.pop %v1202
    %v1211 = vtanh.pop %v1203
    %v1212 = vtanh.pop %v1204
    %v1213 = vtanh.pop %v1205
    %v1214 = vtanh.pop %v1206
    %v1215 = vld [vmem:[#allocation8] sm:$0xff]
    %v1216 = vld [vmem:[#allocation8 + $0x8] sm:$0xff]
    %v1217 = vld [vmem:[#allocation8 + $0x10] sm:$0xff]
    %v1218 = vld [vmem:[#allocation8 + $0x18] sm:$0xff]
    %v1219 = vld [vmem:[#allocation8 + $0x20] sm:$0xff]
    %v1220 = vld [vmem:[#allocation8 + $0x28] sm:$0xff]
    %v1221 = vld [vmem:[#allocation8 + $0x30] sm:$0xff]
    %v1222 = vld [vmem:[#allocation8 + $0x38] sm:$0xff]
    %v1223 = vld [vmem:[#allocation8 + $0x40] sm:$0xff]
    %v1224 = vld [vmem:[#allocation8 + $0x48] sm:$0xff]
    %v1225 = vld [vmem:[#allocation8 + $0x50] sm:$0xff]
    %v1226 = vld [vmem:[#allocation8 + $0x58] sm:$0xff]
    %v1227 = vld [vmem:[#allocation8 + $0x60] sm:$0xff]
    %v1228 = vld [vmem:[#allocation8 + $0x68] sm:$0xff]
    %v1229 = vld [vmem:[#allocation8 + $0x70] sm:$0xff]
    %v1230 = vld [vmem:[#allocation8 + $0x78] sm:$0xff]
    %v1231 = vld [vmem:[%s5] sm:$0x1]
    %v1233 = vlaneseq
    %v1234 = vshrl.u32 %v1233, 7
    %v1235 = vsub.s32 0, %v1234
    %v1236 = vrot.slane %v1231, %v1235
    %v1246 = vrot.slane %v1207, 7
    %v1247 = vrot.slane %v1208, 6
    %v1248 = vsel %vm342, %v1247, %v1246
    %v1249 = vrot.slane %v1209, 5
    %v1250 = vsel %vm345, %v1249, %v1248
    %v1251 = vrot.slane %v1210, 4
    %v1252 = vsel %vm348, %v1251, %v1250
    %v1253 = vrot.slane %v1211, 3
    %v1254 = vsel %vm351, %v1253, %v1252
    %v1255 = vrot.slane %v1212, 2
    %v1256 = vsel %vm354, %v1255, %v1254
    %v1257 = vrot.slane %v1213, 1
    %v1258 = vsel %vm357, %v1257, %v1256
    %v1259 = vsel %vm360, %v1214, %v1258
    %1261 = vmatprep.subr.mxu0 0.0
    %1262 = vmatpush1.msra.mxu0 %v1230
    %1263 = vmatprep.subr.mxu0 0.0
    %1264 = vmatpush1.msra.mxu0 %v1229
    %1265 = vmatprep.subr.mxu0 0.0
    %1266 = vmatpush1.msra.mxu0 %v1228
    %1267 = vmatprep.subr.mxu0 0.0
    %1268 = vmatpush1.msra.mxu0 %v1227
    %1269 = vmatprep.subr.mxu0 0.0
    %1270 = vmatpush1.msra.mxu0 %v1226
    %1271 = vmatprep.subr.mxu0 0.0
    %1272 = vmatpush1.msra.mxu0 %v1225
    %1273 = vmatprep.subr.mxu0 0.0
    %1274 = vmatpush1.msra.mxu0 %v1224
    %1275 = vmatprep.subr.mxu0 0.0
    %1276 = vmatpush1.msra.mxu0 %v1223
    %1277 = vmatprep.subr.mxu0 0.0
    %1278 = vmatpush1.msra.mxu0 %v1222
    %1279 = vmatprep.subr.mxu0 0.0
    %1280 = vmatpush1.msra.mxu0 %v1221
    %1281 = vmatprep.subr.mxu0 0.0
    %1282 = vmatpush1.msra.mxu0 %v1220
    %1283 = vmatprep.subr.mxu0 0.0
    %1284 = vmatpush1.msra.mxu0 %v1219
    %1285 = vmatprep.subr.mxu0 0.0
    %1286 = vmatpush1.msra.mxu0 %v1218
    %1287 = vmatprep.subr.mxu0 0.0
    %1288 = vmatpush1.msra.mxu0 %v1217
    %1289 = vmatprep.subr.mxu0 0.0
    %1290 = vmatpush1.msra.mxu0 %v1216
    %1291 = vmatprep.subr.mxu0 0.0
    %1292 = vmatpush1.msra.mxu0 %v1215
    %1293 = vmatprep.subr.mxu0 0.0
    %1294 = vmatpush2.msra.mxu0 0.0
    %1295 = vmatprep.subr.mxu0 0.0
    %1296 = vmatpush2.msra.mxu0 0.0
    %1297 = vmatprep.subr.mxu0 0.0
    %1298 = vmatpush2.msra.mxu0 0.0
    %1299 = vmatprep.subr.mxu0 0.0
    %1300 = vmatpush2.msra.mxu0 0.0
    %1301 = vmatprep.subr.mxu0 0.0
    %1302 = vmatpush2.msra.mxu0 0.0
    %1303 = vmatprep.subr.mxu0 0.0
    %1304 = vmatpush2.msra.mxu0 0.0
    %1305 = vmatprep.subr.mxu0 0.0
    %1306 = vmatpush2.msra.mxu0 0.0
    %1307 = vmatprep.subr.mxu0 0.0
    %1308 = vmatpush2.msra.mxu0 0.0
    %1309 = vmatprep.subr.mxu0 0.0
    %1310 = vmatpush2.msra.mxu0 0.0
    %1311 = vmatprep.subr.mxu0 0.0
    %1312 = vmatpush2.msra.mxu0 0.0
    %1313 = vmatprep.subr.mxu0 0.0
    %1314 = vmatpush2.msra.mxu0 0.0
    %1315 = vmatprep.subr.mxu0 0.0
    %1316 = vmatpush2.msra.mxu0 0.0
    %1317 = vmatprep.subr.mxu0 0.0
    %1318 = vmatpush2.msra.mxu0 0.0
    %1319 = vmatprep.subr.mxu0 0.0
    %1320 = vmatpush2.msra.mxu0 0.0
    %1321 = vmatprep.subr.mxu0 0.0
    %1322 = vmatpush2.msra.mxu0 0.0
    %1323 = vmatprep.subr.mxu0 0.0
    %1324 = vmatpush2.msra.mxu0 0.0
    %1325 = vmatprep.mubr.f32.mxu0 0.0
    %1326 = vmatmul.mubr.f32.gmra.mxu0 %v1259
    %v1327 = vpop.f32.mrf.mxu0
    %v1328 = vadd.f32 %v1236, %v1327
    %v1329 = vpop.f32.mrf.mxu0
    %1330 = vdwg.mxu0
    %1331 = vst [vmem:[#allocation10] sm:$0xff] %v1328
    // Predicated region
    $region42: #{tpu_custom_call.1} parent=1 // pred_check
      _
    $region43: #{tpu_custom_call.1} parent=1 // pred_check_branch
      %1333 = sbr.rel (0) target = $region45
    $region44: #{tpu_custom_call.1} parent=1 // pred_region
      %s1335 = ssub.s32 128, 128
      %1336 = vsyncadd [#allocation4], %s1335
      %s1338 = sshll.u32 [#allocation10], 4
      %s1339 = int_to_ptr.vmem [resolvable:$true] %s1338
      %1341 = dma.vmem_to_hbm [thread:$0]  %s1339, 128, %s6, [#allocation4]
    $region45: #{tpu_custom_call.1} parent=1 // pred_fallthru
      _
    // Predicated region
    $region46: #{tpu_custom_call.1} parent=1 // pred_check
      _
    $region47: #{tpu_custom_call.1} parent=1 // pred_check_branch
      %1343 = sbr.rel (0) target = $region49
    $region48: #{tpu_custom_call.1} parent=1 // pred_region
      %1344 = dma.done [#allocation4], 128
    $region49: #{tpu_custom_call.1} parent=1 // pred_fallthru
      _
    %1345 = vsyncpa [#allocation3], 1
    %1346 = vsyncpa [#allocation6], 1
    %1347 = vsyncpa [#allocation9], 1
    %1348 = vsyncpa [#allocation4], 1

</llo_original>
